<compile_context>
chip_gen: v7x
topology: tpu7x:2x2x1
jax: 0.10.0
libtpu: 0.0.40
codegen_flags: <defaults>
</compile_context>

<pallas_src>
import functools

import jax
import jax.numpy as jnp
from jax.experimental import pallas as pl
from jax.experimental.pallas import tpu as pltpu


def _masked_ce_kernel(pred_ref, tgt_ref, mask_ref, out_ref, *, n_valid):
    # pred_ref: (1, C, TN)  logits, classes on sublanes, positions lane-dense
    # tgt_ref:  (1, 1, TN)  int32 class indices
    # mask_ref: (1, 1, TN)  mask (>0 == valid)
    # out_ref:  (1, 8, 128) f32 per-batch accumulator:
    #           [0,0,0] += sum of masked CE, [0,1,0] += valid count
    t = pl.program_id(1)

    @pl.when(t == 0)
    def _init():
        out_ref[...] = jnp.zeros_like(out_ref)

    logits = pred_ref[...].astype(jnp.float32)               # (1, C, TN)
    tn = logits.shape[-1]

    # validity = (mask > 0) AND (global position < N).  The second term masks
    # the garbage lanes of a ragged last tile (OOB block reads are not zeroed).
    pos = t * tn + jax.lax.broadcasted_iota(jnp.int32, (1, 1, tn), 2)
    valid = (mask_ref[...] > 0) & (pos < n_valid)             # (1, 1, TN) bool

    # numerically stable log-sum-exp over the class (sublane) axis
    m = jnp.max(logits, axis=1, keepdims=True)                # (1, 1, TN)
    lse = m + jnp.log(jnp.sum(jnp.exp(logits - m), axis=1, keepdims=True))

    # gather the target logit: select-and-reduce against a class iota
    cls = jax.lax.broadcasted_iota(jnp.int32, logits.shape, 1)      # (1, C, TN)
    tgt_logit = jnp.sum(jnp.where(cls == tgt_ref[...], logits, 0.0),
                        axis=1, keepdims=True)                # (1, 1, TN)

    # jnp.where also contains any inf/nan coming from garbage OOB lanes
    ce = jnp.where(valid, lse - tgt_logit, 0.0)               # (1, 1, TN)
    loss_partial = jnp.sum(ce)
    cnt_partial = jnp.sum(valid.astype(jnp.float32))

    # accumulate the two partial scalars into rows 0 / 1, lane 0 of the block
    r = jax.lax.broadcasted_iota(jnp.int32, out_ref.shape, 1)
    c = jax.lax.broadcasted_iota(jnp.int32, out_ref.shape, 2)
    upd = (jnp.where((r == 0) & (c == 0), loss_partial, 0.0)
           + jnp.where((r == 1) & (c == 0), cnt_partial, 0.0))
    out_ref[...] += upd


def classification_loss(predictions, targets, masks, *, tile_n=2048):
    """predictions: (B, N, C) logits; targets: (B, N) ints; masks: (B, N)."""
    B, N, C = predictions.shape

    # Single layout copy of the dominant tensor (classes -> sublanes so the
    # class reductions run over ~C padded-to-16 sublanes, not 128 padded lanes).
    pred_t = jnp.transpose(predictions, (0, 2, 1))            # (B, C, N)
    tgt = targets.astype(jnp.int32).reshape(B, 1, N)          # free reshape
    msk = masks.reshape(B, 1, N)                              # free reshape

    # Tile policy: never pad predictions.  Either one full-extent tile
    # (block dim == full dim is legal for any N), or a 128-multiple tile with
    # the ragged last tile masked in-kernel.
    tile_n = max(128, (int(tile_n) // 128) * 128)
    n128 = ((N + 127) // 128) * 128
    tn = N if n128 <= tile_n else tile_n
    num_tiles = pl.cdiv(N, tn)

    acc = pl.pallas_call(
        functools.partial(_masked_ce_kernel, n_valid=N),
        grid=(B, num_tiles),
        in_specs=[
            pl.BlockSpec((1, C, tn), lambda b, t: (b, 0, t)),
            pl.BlockSpec((1, 1, tn), lambda b, t: (b, 0, t)),
            pl.BlockSpec((1, 1, tn), lambda b, t: (b, 0, t)),
        ],
        # per-batch accumulator block: same block for every tile of batch b
        out_specs=pl.BlockSpec((1, 8, 128), lambda b, t: (b, 0, 0)),
        out_shape=jax.ShapeDtypeStruct((B, 8, 128), jnp.float32),
        compiler_params=pltpu.CompilerParams(
            dimension_semantics=("parallel", "arbitrary")),
    )(pred_t, tgt, msk)

    loss_sum = jnp.sum(acc[:, 0, 0])
    cnt = jnp.sum(acc[:, 1, 0])
    return jnp.where(cnt > 0, loss_sum / jnp.maximum(cnt, 1.0), jnp.float32(0.0))


def _reference(predictions, targets, masks):
    valid = masks > 0
    logp = jax.nn.log_softmax(predictions.astype(jnp.float32), axis=-1)
    ce = -jnp.take_along_axis(
        logp, targets.astype(jnp.int32)[..., None], axis=-1)[..., 0]
    cnt = valid.astype(jnp.float32).sum()
    total = jnp.where(valid, ce, 0.0).sum()
    return jnp.where(cnt > 0, total / jnp.maximum(cnt, 1.0), 0.0)


if __name__ == "__main__":
    key = jax.random.PRNGKey(0)
    k1, k2, k3 = jax.random.split(key, 3)

    # B=2, H=20, W=32 -> N=640 positions, 10 classes
    B, H, W, num_classes = 2, 20, 32, 10
    N = H * W
    predictions = jax.random.normal(k1, (B, N, num_classes), dtype=jnp.float32)
    targets = jax.random.randint(k2, (B, N), 0, num_classes, dtype=jnp.int32)
    masks = jax.random.bernoulli(k3, p=0.6, shape=(B, N)).astype(jnp.int32)

    ref = _reference(predictions, targets, masks)

    # default path: a single full-extent tile per batch (no padding, no OOB)
    out = jax.block_until_ready(classification_loss(predictions, targets, masks))
    assert jnp.allclose(out, ref, rtol=1e-5, atol=1e-5), (out, ref)

    # multi-tile path with a ragged last tile (640 = 2*256 + 128, OOB masked)
    out_tiled = jax.block_until_ready(
        classification_loss(predictions, targets, masks, tile_n=256))
    assert jnp.allclose(out_tiled, ref, rtol=1e-5, atol=1e-5), (out_tiled, ref)

    # bf16 predictions pass straight through; kernel upcasts to f32 internally
    pred_bf16 = predictions.astype(jnp.bfloat16)
    out_bf16 = jax.block_until_ready(
        classification_loss(pred_bf16, targets, masks))
    ref_bf16 = _reference(pred_bf16, targets, masks)
    assert jnp.allclose(out_bf16, ref_bf16, rtol=1e-3, atol=1e-3), (out_bf16, ref_bf16)

    # degenerate case: no valid positions -> 0.0 (matches PyTorch early return)
    zero_masks = jnp.zeros((B, N), dtype=jnp.int32)
    out0 = jax.block_until_ready(
        classification_loss(predictions, targets, zero_masks))
    assert jnp.allclose(out0, 0.0, atol=1e-7), out0

    print("KERNEL_OK")
</pallas_src>

<mosaic_0001>
module attributes {stable_mosaic.version = 11 : i64} {
  func.func @_masked_ce_kernel(%arg0: i32, %arg1: i32, %arg2: memref<1x10x640xf32, #tpu.memory_space<vmem>>, %arg3: memref<1x1x640xi32, #tpu.memory_space<vmem>>, %arg4: memref<1x1x640xi32, #tpu.memory_space<vmem>>, %arg5: memref<1x8x128xf32, #tpu.memory_space<vmem>>) attributes {dimension_semantics = [#tpu.dimension_semantics<parallel>, #tpu.dimension_semantics<arbitrary>], iteration_bounds = array<i64: 2, 1>, scalar_prefetch = 0 : i64, scratch_operands = 0 : i64, tpu.core_type = #tpu.core_type<tc>, window_params = [{transform_indices = @transform_0, window_bounds = array<i64: 1, 10, 640>}, {transform_indices = @transform_1, window_bounds = array<i64: 1, 1, 640>}, {transform_indices = @transform_2, window_bounds = array<i64: 1, 1, 640>}, {transform_indices = @transform_3, window_bounds = array<i64: 1, 8, 128>}]} {
    %c0_i32 = arith.constant 0 : i32
    %0 = arith.cmpi eq, %arg1, %c0_i32 : i32
    %1 = arith.extui %0 : i1 to i32
    %c0_i32_0 = arith.constant 0 : i32
    %2 = arith.cmpi ne, %1, %c0_i32_0 : i32
    scf.if %2 {
      %cst_28 = arith.constant 0.000000e+00 : f32
      %66 = vector.broadcast %cst_28 : f32 to vector<1x8x128xf32>
      %c0_29 = arith.constant 0 : index
      %c0_30 = arith.constant 0 : index
      %c0_31 = arith.constant 0 : index
      %67 = vector.load %arg5[%c0_29, %c0_30, %c0_31] : memref<1x8x128xf32, #tpu.memory_space<vmem>>, vector<1x8x128xf32>
      tpu.vector_store %arg5[%c0_29, %c0_30, %c0_31], %66 {strides = array<i32>} : memref<1x8x128xf32, #tpu.memory_space<vmem>>, vector<1x8x128xf32>,
    } else {
    }
    %c0 = arith.constant 0 : index
    %c0_1 = arith.constant 0 : index
    %c0_2 = arith.constant 0 : index
    %3 = vector.load %arg2[%c0, %c0_1, %c0_2] : memref<1x10x640xf32, #tpu.memory_space<vmem>>, vector<1x10x640xf32>
    %c640_i32 = arith.constant 640 : i32
    %4 = arith.muli %arg1, %c640_i32 : i32
    %5 = tpu.iota {dimensions = array<i32: 2>} : vector<1x1x640xi32>
    %6 = vector.broadcast %4 : i32 to vector<1x1x640xi32>
    %7 = arith.addi %6, %5 : vector<1x1x640xi32>
    %c0_3 = arith.constant 0 : index
    %c0_4 = arith.constant 0 : index
    %c0_5 = arith.constant 0 : index
    %8 = vector.load %arg4[%c0_3, %c0_4, %c0_5] : memref<1x1x640xi32, #tpu.memory_space<vmem>>, vector<1x1x640xi32>
    %c0_i32_6 = arith.constant 0 : i32
    %9 = vector.broadcast %c0_i32_6 : i32 to vector<1x1x640xi32>
    %10 = arith.cmpi sgt, %8, %9 : vector<1x1x640xi32>
    %c640_i32_7 = arith.constant 640 : i32
    %11 = vector.broadcast %c640_i32_7 : i32 to vector<1x1x640xi32>
    %12 = arith.cmpi slt, %7, %11 : vector<1x1x640xi32>
    %13 = arith.andi %10, %12 : vector<1x1x640xi1>
    %cst = arith.constant dense<0xFF800000> : vector<1x640xf32>
    %14 = vector.multi_reduction <maximumf>, %3, %cst [1] : vector<1x10x640xf32> to vector<1x640xf32>
    %15 = vector.shape_cast %14 : vector<1x640xf32> to vector<1x1x640xf32>
    %16 = vector.broadcast %15 : vector<1x1x640xf32> to vector<1x10x640xf32>
    %17 = arith.subf %3, %16 : vector<1x10x640xf32>
    %18 = math.exp %17 : vector<1x10x640xf32>
    %cst_8 = arith.constant dense<0.000000e+00> : vector<1x640xf32>
    %19 = vector.multi_reduction <add>, %18, %cst_8 [1] : vector<1x10x640xf32> to vector<1x640xf32>
    %20 = vector.shape_cast %19 : vector<1x640xf32> to vector<1x1x640xf32>
    %21 = math.log %20 : vector<1x1x640xf32>
    %22 = arith.addf %15, %21 : vector<1x1x640xf32>
    %23 = tpu.iota {dimensions = array<i32: 1>} : vector<1x10x640xi32>
    %c0_9 = arith.constant 0 : index
    %c0_10 = arith.constant 0 : index
    %c0_11 = arith.constant 0 : index
    %24 = vector.load %arg3[%c0_9, %c0_10, %c0_11] : memref<1x1x640xi32, #tpu.memory_space<vmem>>, vector<1x1x640xi32>
    %25 = vector.broadcast %24 : vector<1x1x640xi32> to vector<1x10x640xi32>
    %26 = arith.cmpi eq, %23, %25 : vector<1x10x640xi32>
    %cst_12 = arith.constant 0.000000e+00 : f32
    %27 = vector.broadcast %cst_12 : f32 to vector<1x10x640xf32>
    %28 = arith.select %26, %3, %27 : vector<1x10x640xi1>, vector<1x10x640xf32>
    %cst_13 = arith.constant dense<0.000000e+00> : vector<1x640xf32>
    %29 = vector.multi_reduction <add>, %28, %cst_13 [1] : vector<1x10x640xf32> to vector<1x640xf32>
    %30 = vector.shape_cast %29 : vector<1x640xf32> to vector<1x1x640xf32>
    %31 = arith.subf %22, %30 : vector<1x1x640xf32>
    %cst_14 = arith.constant 0.000000e+00 : f32
    %32 = vector.broadcast %cst_14 : f32 to vector<1x1x640xf32>
    %33 = arith.select %13, %31, %32 : vector<1x1x640xi1>, vector<1x1x640xf32>
    %34 = vector.shape_cast %33 : vector<1x1x640xf32> to vector<1x1x1x640xf32>
    %cst_15 = arith.constant dense<0.000000e+00> : vector<1xf32>
    %35 = vector.multi_reduction <add>, %34, %cst_15 [1, 2, 3] : vector<1x1x1x640xf32> to vector<1xf32>
    %36 = vector.shape_cast %35 : vector<1xf32> to vector<1x1x1x1xf32>
    %37 = vector.extract %36[0, 0, 0, 0] : f32 from vector<1x1x1x1xf32>
    %38 = arith.extui %13 : vector<1x1x640xi1> to vector<1x1x640xi32>
    %39 = arith.sitofp %38 : vector<1x1x640xi32> to vector<1x1x640xf32>
    %40 = vector.shape_cast %39 : vector<1x1x640xf32> to vector<1x1x1x640xf32>
    %cst_16 = arith.constant dense<0.000000e+00> : vector<1xf32>
    %41 = vector.multi_reduction <add>, %40, %cst_16 [1, 2, 3] : vector<1x1x1x640xf32> to vector<1xf32>
    %42 = vector.shape_cast %41 : vector<1xf32> to vector<1x1x1x1xf32>
    %43 = vector.extract %42[0, 0, 0, 0] : f32 from vector<1x1x1x1xf32>
    %44 = tpu.iota {dimensions = array<i32: 1>} : vector<1x8x128xi32>
    %45 = tpu.iota {dimensions = array<i32: 2>} : vector<1x8x128xi32>
    %c0_i32_17 = arith.constant 0 : i32
    %46 = vector.broadcast %c0_i32_17 : i32 to vector<1x8x128xi32>
    %47 = arith.cmpi eq, %44, %46 : vector<1x8x128xi32>
    %c0_i32_18 = arith.constant 0 : i32
    %48 = vector.broadcast %c0_i32_18 : i32 to vector<1x8x128xi32>
    %49 = arith.cmpi eq, %45, %48 : vector<1x8x128xi32>
    %50 = arith.andi %47, %49 : vector<1x8x128xi1>
    %cst_19 = arith.constant 0.000000e+00 : f32
    %51 = vector.broadcast %37 : f32 to vector<1x8x128xf32>
    %52 = vector.broadcast %cst_19 : f32 to vector<1x8x128xf32>
    %53 = arith.select %50, %51, %52 : vector<1x8x128xi1>, vector<1x8x128xf32>
    %c1_i32 = arith.constant 1 : i32
    %54 = vector.broadcast %c1_i32 : i32 to vector<1x8x128xi32>
    %55 = arith.cmpi eq, %44, %54 : vector<1x8x128xi32>
    %c0_i32_20 = arith.constant 0 : i32
    %56 = vector.broadcast %c0_i32_20 : i32 to vector<1x8x128xi32>
    %57 = arith.cmpi eq, %45, %56 : vector<1x8x128xi32>
    %58 = arith.andi %55, %57 : vector<1x8x128xi1>
    %cst_21 = arith.constant 0.000000e+00 : f32
    %59 = vector.broadcast %43 : f32 to vector<1x8x128xf32>
    %60 = vector.broadcast %cst_21 : f32 to vector<1x8x128xf32>
    %61 = arith.select %58, %59, %60 : vector<1x8x128xi1>, vector<1x8x128xf32>
    %62 = arith.addf %53, %61 : vector<1x8x128xf32>
    %c0_22 = arith.constant 0 : index
    %c0_23 = arith.constant 0 : index
    %c0_24 = arith.constant 0 : index
    %63 = vector.load %arg5[%c0_22, %c0_23, %c0_24] : memref<1x8x128xf32, #tpu.memory_space<vmem>>, vector<1x8x128xf32>
    %64 = arith.addf %63, %62 : vector<1x8x128xf32>
    %c0_25 = arith.constant 0 : index
    %c0_26 = arith.constant 0 : index
    %c0_27 = arith.constant 0 : index
    %65 = vector.load %arg5[%c0_25, %c0_26, %c0_27] : memref<1x8x128xf32, #tpu.memory_space<vmem>>, vector<1x8x128xf32>
    tpu.vector_store %arg5[%c0_25, %c0_26, %c0_27], %64 {strides = array<i32>} : memref<1x8x128xf32, #tpu.memory_space<vmem>>, vector<1x8x128xf32>,
    return
  }
  func.func @transform_0(%arg0: i32, %arg1: i32) -> (i32, i32, i32) {
    %c0_i32 = arith.constant 0 : i32
    %c0_i32_0 = arith.constant 0 : i32
    return %arg0, %c0_i32, %arg1 : i32, i32, i32
  }
  func.func @transform_1(%arg0: i32, %arg1: i32) -> (i32, i32, i32) {
    %c0_i32 = arith.constant 0 : i32
    %c0_i32_0 = arith.constant 0 : i32
    return %arg0, %c0_i32, %arg1 : i32, i32, i32
  }
  func.func @transform_2(%arg0: i32, %arg1: i32) -> (i32, i32, i32) {
    %c0_i32 = arith.constant 0 : i32
    %c0_i32_0 = arith.constant 0 : i32
    return %arg0, %c0_i32, %arg1 : i32, i32, i32
  }
  func.func @transform_3(%arg0: i32, %arg1: i32) -> (i32, i32, i32) {
    %c0_i32 = arith.constant 0 : i32
    %c0_i32_0 = arith.constant 0 : i32
    %c0_i32_1 = arith.constant 0 : i32
    return %arg0, %c0_i32, %c0_i32_0 : i32, i32, i32
  }
}

</mosaic_0001>

<llo_original>
// kernel: tpu_custom_call.1
$region0: #{tpu_custom_call.1}
  #allocation0 [shape = 'u32[]', space=smem, size = 0x4, offset = 0x4, fixed_abs, tag = 'smem constant byte address 0x4 - core index']
  #allocation1 [shape = 'u32[144,128]{1,0:T(1,128)}', space=vmem, size = 0x12000, scoped, tag = 'internal scratch']
  %s0 = inlined_call_operand.vmem [shape: f32[2,10,640], index: 0, kind: input, shape index: {}]
  %s1 = inlined_call_operand.vmem [shape: s32[2,1,640], index: 1, kind: input, shape index: {}]
  %s2 = inlined_call_operand.vmem [shape: s32[2,1,640], index: 2, kind: input, shape index: {}]
  %s3 = inlined_call_operand.hbm [shape: f32[2,8,128], index: 3, kind: output, shape index: {}]
  %s4 = sld [smem:[#allocation0]]
  $region49: #{tpu_custom_call.1} parent=0
    _
  %s6 = ssub.s32 1, %s4
  %s7 = scalar_select 0, %s6, %s4
  $region1: #{tpu_custom_call.1} parent=0
    #allocation2 [shape = 'u8[8192]{0}', space=vmem, size = 0x2000, scoped, tag = 'output window, operand 0']
    #allocation3 [shape = 's32[2]{0}', space=sflag, size = 0x8, scoped, tag = 'scoped memory for tpu_custom_call.1']
    %8 = vsyncpa [#allocation3], 0
    %s9 = scalar_lea.sflag [#allocation3], 1
    %10 = vsyncpa %s9, 0
    loop: start=0, step=1, limit=4
    $region2: #{tpu_custom_call.1} parent=1 // loop_pre_header
      _
    $region3: #{tpu_custom_call.1} parent=1 // loop_header
      %s12 = sphi 0, %s16
      %p13 = scmp.ge.s32.totalorder %s12, 4
      %s19 = sphi 0, %s31
      %s20 = sphi 0, %s27
      %s21 = sphi 0, %s19
      %s22 = sphi 0, %s20
      %s23 = sphi 0, %s21
      %s24 = sphi 0, %s22
      %s36 = sphi 0, %s38
      %s39 = sphi 0, %s36
      %s40 = sphi 0, %s39
      %s56 = sphi 0, %s40
      %s64 = sphi 0, %s66
      %s67 = sphi 0, %s64
      %s68 = sphi 0, %s67
      %s84 = sphi 0, %s68
      %s92 = sphi 0, %s94
      %s95 = sphi 0, %s92
      %s96 = sphi 0, %s95
      %s112 = sphi 0, %s96
      %s118 = sphi 0, %s120
      %s121 = sphi 0, %s118
      %s122 = sphi 0, %s121
      %s138 = sphi 0, %s122
    $region4: #{tpu_custom_call.1} parent=1 // loop_header_branch
      %15 = sbr.rel (%p13) target = $region8
    $region5: #{tpu_custom_call.1} parent=1 // loop_body
      %s17 = ssub.s32 %s12, 1
      %s18 = ssub.s32 %s12, 2
      %s25 = sadd.s32 1, %s20
      %p26 = scmp.ge.s32.totalorder %s25, 1
      %s27 = scalar_select %p26, 0, %s25
      %s28 = sadd.s32 1, %s19
      %s29 = scalar_select %p26, %s28, %s19
      %p30 = scmp.ge.s32.totalorder %s29, 2
      %s31 = scalar_select %p30, 0, %s29
      %s32 = ssub.s32 %s19, %s31
      %s33 = ssub.s32 %s20, %s27
      %s34 = sor.u32 %s32, %s33
      %p35 = scmp.eq.s32.totalorder %s34, 0
      %s37 = sadd.s32 %s36, 1
      %s38 = scalar_select %p35, %s36, %s37
      %p41 = pneg %p35
      %p42 = scmp.eq.s32.totalorder %s12, 1
      %p43 = por %p41, %p42
      %p44 = scmp.ne.s32.totalorder %s36, %s39
      %p45 = scmp.eq.s32.totalorder %s12, 0
      %p46 = por %p44, %p45
      %p47 = scmp.ne.s32.totalorder %s36, %s39
      %p48 = scmp.eq.s32.totalorder %s17, 1
      %p49 = por %p47, %p48
      %p50 = scmp.ne.s32.totalorder %s39, %s40
      %p51 = scmp.eq.s32.totalorder %s17, 0
      %p52 = por %p50, %p51
      %p53 = scmp.ne.s32.totalorder %s39, %s40
      %p54 = scmp.eq.s32.totalorder %s18, 1
      %p55 = por %p53, %p54
      %p57 = scmp.ne.s32.totalorder %s40, %s56
      %p58 = scmp.eq.s32.totalorder %s18, 0
      %p59 = por %p57, %p58
      %s60 = ssub.s32 %s19, %s31
      %s61 = ssub.s32 %s20, %s27
      %s62 = sor.u32 %s60, %s61
      %p63 = scmp.eq.s32.totalorder %s62, 0
      %s65 = sadd.s32 %s64, 1
      %s66 = scalar_select %p63, %s64, %s65
      %p69 = pneg %p63
      %p70 = scmp.eq.s32.totalorder %s12, 1
      %p71 = por %p69, %p70
      %p72 = scmp.ne.s32.totalorder %s64, %s67
      %p73 = scmp.eq.s32.totalorder %s12, 0
      %p74 = por %p72, %p73
      %p75 = scmp.ne.s32.totalorder %s64, %s67
      %p76 = scmp.eq.s32.totalorder %s17, 1
      %p77 = por %p75, %p76
      %p78 = scmp.ne.s32.totalorder %s67, %s68
      %p79 = scmp.eq.s32.totalorder %s17, 0
      %p80 = por %p78, %p79
      %p81 = scmp.ne.s32.totalorder %s67, %s68
      %p82 = scmp.eq.s32.totalorder %s18, 1
      %p83 = por %p81, %p82
      %p85 = scmp.ne.s32.totalorder %s68, %s84
      %p86 = scmp.eq.s32.totalorder %s18, 0
      %p87 = por %p85, %p86
      %s88 = ssub.s32 %s19, %s31
      %s89 = ssub.s32 %s20, %s27
      %s90 = sor.u32 %s88, %s89
      %p91 = scmp.eq.s32.totalorder %s90, 0
      %s93 = sadd.s32 %s92, 1
      %s94 = scalar_select %p91, %s92, %s93
      %p97 = pneg %p91
      %p98 = scmp.eq.s32.totalorder %s12, 1
      %p99 = por %p97, %p98
      %p100 = scmp.ne.s32.totalorder %s92, %s95
      %p101 = scmp.eq.s32.totalorder %s12, 0
      %p102 = por %p100, %p101
      %p103 = scmp.ne.s32.totalorder %s92, %s95
      %p104 = scmp.eq.s32.totalorder %s17, 1
      %p105 = por %p103, %p104
      %p106 = scmp.ne.s32.totalorder %s95, %s96
      %p107 = scmp.eq.s32.totalorder %s17, 0
      %p108 = por %p106, %p107
      %p109 = scmp.ne.s32.totalorder %s95, %s96
      %p110 = scmp.eq.s32.totalorder %s18, 1
      %p111 = por %p109, %p110
      %p113 = scmp.ne.s32.totalorder %s96, %s112
      %p114 = scmp.eq.s32.totalorder %s18, 0
      %p115 = por %p113, %p114
      %s116 = ssub.s32 %s19, %s31
      %p117 = scmp.eq.s32.totalorder %s116, 0
      %s119 = sadd.s32 %s118, 1
      %s120 = scalar_select %p117, %s118, %s119
      %p123 = pneg %p117
      %p124 = scmp.eq.s32.totalorder %s12, 1
      %p125 = por %p123, %p124
      %p126 = scmp.ne.s32.totalorder %s118, %s121
      %p127 = scmp.eq.s32.totalorder %s12, 0
      %p128 = por %p126, %p127
      %p129 = scmp.ne.s32.totalorder %s118, %s121
      %p130 = scmp.eq.s32.totalorder %s17, 1
      %p131 = por %p129, %p130
      %p132 = scmp.ne.s32.totalorder %s121, %s122
      %p133 = scmp.eq.s32.totalorder %s17, 0
      %p134 = por %p132, %p133
      %p135 = scmp.ne.s32.totalorder %s121, %s122
      %p136 = scmp.eq.s32.totalorder %s18, 1
      %p137 = por %p135, %p136
      %p139 = scmp.ne.s32.totalorder %s122, %s138
      %p140 = scmp.eq.s32.totalorder %s18, 0
      %p141 = por %p139, %p140
      %p142 = scmp.le.s32.totalorder 1, %s12
      %p143 = scmp.lt.s32.totalorder %s12, 3
      %p144 = pnand %p142, %p143
      %p145 = pneg %p144
      // Predicated region
      $region9: #{tpu_custom_call.1} parent=5 // pred_check
        _
      $region10: #{tpu_custom_call.1} parent=5 // pred_check_branch
        %147 = sbr.rel (%p144) target = $region12
      $region11: #{tpu_custom_call.1} parent=5 // pred_region
        %s148 = ssub.s32 %s12, 1
      $region12: #{tpu_custom_call.1} parent=5 // pred_fallthru
        _
      %p149 = scmp.lt.s32.totalorder %s12, 2
      // Predicated region
      $region13: #{tpu_custom_call.1} parent=5 // pred_check
        %p150 = pneg %p149
      $region14: #{tpu_custom_call.1} parent=5 // pred_check_branch
        %152 = sbr.rel (%p150) target = $region16
      $region15: #{tpu_custom_call.1} parent=5 // pred_region
        // Predicated region
        $region17: #{tpu_custom_call.1} parent=15 // pred_check
          %p153 = pneg %p46
        $region18: #{tpu_custom_call.1} parent=15 // pred_check_branch
          %155 = sbr.rel (%p153) target = $region20
        $region19: #{tpu_custom_call.1} parent=15 // pred_region
          %s156 = smul.u32 5, %s20
          %p157 = scmp.lt.s32.totalorder %s19, 1
          %s158 = scalar_select %p157, %s19, 1
          %p159 = scmp.lt.s32.totalorder %s156, 4
          %s160 = scalar_select %p159, %s156, 4
          %s161 = smul.addr %s158, 10
          %s162 = sadd.s32 %s160, %s161
          %s163 = smul.addr %s162, 8
          %s164 = scalar_lea.vmem %s0, %s163
          %s165 = smul.u32 5, %s20
        $region20: #{tpu_custom_call.1} parent=15 // pred_fallthru
          _
        // Predicated region
        $region21: #{tpu_custom_call.1} parent=15 // pred_check
          %p166 = pneg %p74
        $region22: #{tpu_custom_call.1} parent=15 // pred_check_branch
          %168 = sbr.rel (%p166) target = $region24
        $region23: #{tpu_custom_call.1} parent=15 // pred_region
          %s169 = smul.u32 5, %s20
          %p170 = scmp.lt.s32.totalorder %s19, 1
          %s171 = scalar_select %p170, %s19, 1
          %p172 = scmp.lt.s32.totalorder %s169, 4
          %s173 = scalar_select %p172, %s169, 4
          %s174 = smul.addr %s171, 5
          %s175 = sadd.s32 %s173, %s174
          %s176 = scalar_lea.vmem %s1, %s175
          %s177 = smul.u32 5, %s20
        $region24: #{tpu_custom_call.1} parent=15 // pred_fallthru
          _
        // Predicated region
        $region25: #{tpu_custom_call.1} parent=15 // pred_check
          %p178 = pneg %p102
        $region26: #{tpu_custom_call.1} parent=15 // pred_check_branch
          %180 = sbr.rel (%p178) target = $region28
        $region27: #{tpu_custom_call.1} parent=15 // pred_region
          %s181 = smul.u32 5, %s20
          %p182 = scmp.lt.s32.totalorder %s19, 1
          %s183 = scalar_select %p182, %s19, 1
          %p184 = scmp.lt.s32.totalorder %s181, 4
          %s185 = scalar_select %p184, %s181, 4
          %s186 = smul.addr %s183, 5
          %s187 = sadd.s32 %s185, %s186
          %s188 = scalar_lea.vmem %s2, %s187
          %s189 = smul.u32 5, %s20
        $region28: #{tpu_custom_call.1} parent=15 // pred_fallthru
          _
      $region16: #{tpu_custom_call.1} parent=5 // pred_fallthru
        _
      %p190 = scmp.le.s32.totalorder 1, %s12
      %p191 = scmp.lt.s32.totalorder %s12, 3
      %p192 = pnand %p190, %p191
      %p193 = pneg %p192
      // Predicated region
      $region29: #{tpu_custom_call.1} parent=5 // pred_check
        _
      $region30: #{tpu_custom_call.1} parent=5 // pred_check_branch
        %195 = sbr.rel (%p192) target = $region32
      $region31: #{tpu_custom_call.1} parent=5 // pred_region
        %s196 = ssub.s32 %s12, 1
        %s197 = smul.u32 5, %s22
        %p198 = scmp.lt.s32.totalorder %s21, 1
        %s199 = scalar_select %p198, %s21, 1
        %p200 = scmp.lt.s32.totalorder %s197, 4
        %s201 = scalar_select %p200, %s197, 4
        %s202 = smul.addr %s199, 10
        %s203 = sadd.s32 %s201, %s202
        %s204 = smul.addr %s203, 8
        %s205 = scalar_lea.vmem %s0, %s204
        %p206 = pneg %p52
        %p207 = pneg %p49
        %s208 = smul.u32 5, %s22
        %p209 = scmp.lt.s32.totalorder %s21, 1
        %s210 = scalar_select %p209, %s21, 1
        %p211 = scmp.lt.s32.totalorder %s208, 4
        %s212 = scalar_select %p211, %s208, 4
        %s213 = smul.addr %s210, 5
        %s214 = sadd.s32 %s212, %s213
        %s215 = scalar_lea.vmem %s1, %s214
        %p216 = pneg %p80
        %p217 = pneg %p77
        %s218 = smul.u32 5, %s22
        %p219 = scmp.lt.s32.totalorder %s21, 1
        %s220 = scalar_select %p219, %s21, 1
        %p221 = scmp.lt.s32.totalorder %s218, 4
        %s222 = scalar_select %p221, %s218, 4
        %s223 = smul.addr %s220, 5
        %s224 = sadd.s32 %s222, %s223
        %s225 = scalar_lea.vmem %s2, %s224
        %p226 = pneg %p108
        %p227 = pneg %p105
        %p228 = pneg %p134
        %p229 = pneg %p131
        %s230 = sand.u32 %s121, 1
        %s231 = scalar_lea.sflag [#allocation3], %s230
        %s232 = sand.u32 %s121, 1
        %s233 = smul.addr %s232, 8
        %s234 = scalar_lea.vmem [#allocation2], %s233
        %s235 = smul.u32 5, %s22
        %p236 = scmp.lt.s32.totalorder %s21, 1
        %s237 = scalar_select %p236, %s21, 1
        %p238 = scmp.lt.s32.totalorder %s235, 4
        %s239 = scalar_select %p238, %s235, 4
        %s240 = smul.addr %s237, 10
        %s241 = sadd.s32 %s239, %s240
        %s242 = smul.addr %s241, 8
        %s243 = scalar_lea.vmem %s0, %s242
        %s244 = smul.u32 5, %s22
        %s245 = smul.u32 5, %s22
        %p246 = scmp.lt.s32.totalorder %s21, 1
        %s247 = scalar_select %p246, %s21, 1
        %p248 = scmp.lt.s32.totalorder %s245, 4
        %s249 = scalar_select %p248, %s245, 4
        %s250 = smul.addr %s247, 5
        %s251 = sadd.s32 %s249, %s250
        %s252 = scalar_lea.vmem %s1, %s251
        %s253 = smul.u32 5, %s22
        %s254 = smul.u32 5, %s22
        %p255 = scmp.lt.s32.totalorder %s21, 1
        %s256 = scalar_select %p255, %s21, 1
        %p257 = scmp.lt.s32.totalorder %s254, 4
        %s258 = scalar_select %p257, %s254, 4
        %s259 = smul.addr %s256, 5
        %s260 = sadd.s32 %s258, %s259
        %s261 = scalar_lea.vmem %s2, %s260
        %s262 = smul.u32 5, %s22
        %p263 = scmp.eq.s32.totalorder %s22, 0
        // Predicated region
        $region33: #{tpu_custom_call.1} parent=31 // pred_check
          %p264 = pneg %p263
        $region34: #{tpu_custom_call.1} parent=31 // pred_check_branch
          %266 = sbr.rel (%p264) target = $region36
        $region35: #{tpu_custom_call.1} parent=31 // pred_region
          %267 = vst [vmem:[%s234] sm:$0xff] 0.0
        $region36: #{tpu_custom_call.1} parent=31 // pred_fallthru
          _
        %v268 = vld [vmem:[%s243] sm:$0xff]
        %v269 = vld [vmem:[%s243 + $0x8] sm:$0xff]
        %v270 = vld [vmem:[%s243 + $0x10] sm:$0xff]
        %v271 = vld [vmem:[%s243 + $0x18] sm:$0xff]
        %v272 = vld [vmem:[%s243 + $0x20] sm:$0xff]
        %v273 = vld [vmem:[%s243 + $0x28] sm:$0x3]
        %v274 = vld [vmem:[%s243 + $0x30] sm:$0x3]
        %v275 = vld [vmem:[%s243 + $0x38] sm:$0x3]
        %v276 = vld [vmem:[%s243 + $0x40] sm:$0x3]
        %v277 = vld [vmem:[%s243 + $0x48] sm:$0x3]
        %s278 = smul.u32 %s22, 640
        %v279 = vlaneseq
        %v280 = vand.u32 %v279, 127
        %v281 = vadd.s32 %v280, 128
        %v282 = vadd.s32 %v280, 256
        %v283 = vadd.s32 %v280, 384
        %v284 = vadd.s32 %v280, 512
        %v285 = vstv %s278
        %v286 = vadd.s32 %v285, %v280
        %v287 = vadd.s32 %v285, %v281
        %v288 = vadd.s32 %v285, %v282
        %v289 = vadd.s32 %v285, %v283
        %v290 = vadd.s32 %v285, %v284
        %v291 = vld [vmem:[%s261] sm:$0x1f]
        %vm292 = vcmp.gt.s32.totalorder %v291, 0
        %vm293 = vcmp.lt.s32.totalorder %v286, 640
        %vm294 = vcmp.lt.s32.totalorder %v287, 640
        %vm295 = vcmp.lt.s32.totalorder %v288, 640
        %vm296 = vcmp.lt.s32.totalorder %v289, 640
        %vm297 = vcmp.lt.s32.totalorder %v290, 640
        %v298 = vsel %vm293, 1, 0
        %v299 = vsel %vm294, 1, 0
        %v300 = vsel %vm295, 1, 0
        %v301 = vsel %vm296, 1, 0
        %v302 = vsel %vm297, 1, 0
        %v303 = vcombine.low %v298, %v299
        %v304 = vcombine.low %v300, %v301
        %v306 = vunpack.c.l.s4 1966171168
        %v307 = vunpack.c.0.s8 %v306
        %v308 = vlaneseq
        %v309 = vshrl.u32 %v308, 7
        %v310 = vsub.s32 %v307, %v309
        %v311 = vrot.slane %v303, %v310
        %v313 = vunpack.c.l.s4 1966171168
        %v314 = vunpack.c.0.s8 %v313
        %v315 = vlaneseq
        %v316 = vshrl.u32 %v315, 7
        %v317 = vsub.s32 %v314, %v316
        %v318 = vrot.slane %v304, %v317
        %v320 = vunpack.c.l.s4 1966171168
        %v321 = vunpack.c.0.s8 %v320
        %v322 = vlaneseq
        %v323 = vshrl.u32 %v322, 7
        %v324 = vsub.s32 %v321, %v323
        %v325 = vrot.slane %v302, %v324
        %v326 = vcombine.low %v311, %v318
        %v328 = vunpack.c.l.s4 1966171168
        %v329 = vunpack.c.0.s8 %v328
        %v330 = vlaneseq
        %v331 = vshrl.u32 %v330, 7
        %v332 = vsub.s32 %v329, %v331
        %v333 = vrot.slane %v326, %v332
        %v335 = vunpack.c.l.s4 1966171168
        %v336 = vunpack.c.0.s8 %v335
        %v337 = vlaneseq
        %v338 = vshrl.u32 %v337, 7
        %v339 = vsub.s32 %v336, %v338
        %v340 = vrot.slane %v325, %v339
        %v341 = vcombine.low %v333, %v340
        %vm342 = vcmp.ne.s32.totalorder %v341, 0
        %vm343 = vmand %vm292, %vm342
        %vm344 = vcmask 1041408
        %v345 = vsel %vm344, %v273, -inf
        %v346 = vmax.f32 %v268, %v345
        %v347 = vrot.slane %v346, 4
        %v348 = vmax.f32 %v346, %v347
        %v349 = vrot.slane %v348, 2
        %v350 = vmax.f32 %v348, %v349
        %v351 = vrot.slane %v350, 1
        %v352 = vmax.f32 %v350, %v351
        %v353 = vsel %vm344, %v274, -inf
        %v354 = vmax.f32 %v269, %v353
        %v355 = vrot.slane %v354, 4
        %v356 = vmax.f32 %v354, %v355
        %v357 = vrot.slane %v356, 2
        %v358 = vmax.f32 %v356, %v357
        %v359 = vrot.slane %v358, 1
        %v360 = vmax.f32 %v358, %v359
        %v361 = vsel %vm344, %v275, -inf
        %v362 = vmax.f32 %v270, %v361
        %v363 = vrot.slane %v362, 4
        %v364 = vmax.f32 %v362, %v363
        %v365 = vrot.slane %v364, 2
        %v366 = vmax.f32 %v364, %v365
        %v367 = vrot.slane %v366, 1
        %v368 = vmax.f32 %v366, %v367
        %v369 = vsel %vm344, %v276, -inf
        %v370 = vmax.f32 %v271, %v369
        %v371 = vrot.slane %v370, 4
        %v372 = vmax.f32 %v370, %v371
        %v373 = vrot.slane %v372, 2
        %v374 = vmax.f32 %v372, %v373
        %v375 = vrot.slane %v374, 1
        %v376 = vmax.f32 %v374, %v375
        %v377 = vsel %vm344, %v277, -inf
        %v378 = vmax.f32 %v272, %v377
        %v379 = vrot.slane %v378, 4
        %v380 = vmax.f32 %v378, %v379
        %v381 = vrot.slane %v380, 2
        %v382 = vmax.f32 %v380, %v381
        %v383 = vrot.slane %v382, 1
        %v384 = vmax.f32 %v382, %v383
        %v385 = vsub.f32 %v268, %v352
        %v386 = vsub.f32 %v269, %v360
        %v387 = vsub.f32 %v270, %v368
        %v388 = vsub.f32 %v271, %v376
        %v389 = vsub.f32 %v272, %v384
        %v390 = vsub.f32 %v273, %v352
        %v391 = vsub.f32 %v274, %v360
        %v392 = vsub.f32 %v275, %v368
        %v393 = vsub.f32 %v276, %v376
        %v394 = vsub.f32 %v277, %v384
        %v395 = vmul.f32 %v385, 1.442695
        %v396 = vpow.pop %v395
        %v397 = vmul.f32 %v386, 1.442695
        %v398 = vpow.pop %v397
        %v399 = vmul.f32 %v387, 1.442695
        %v400 = vpow.pop %v399
        %v401 = vmul.f32 %v388, 1.442695
        %v402 = vpow.pop %v401
        %v403 = vmul.f32 %v389, 1.442695
        %v404 = vpow.pop %v403
        %v405 = vmul.f32 %v390, 1.442695
        %v406 = vpow.pop %v405
        %v407 = vmul.f32 %v391, 1.442695
        %v408 = vpow.pop %v407
        %v409 = vmul.f32 %v392, 1.442695
        %v410 = vpow.pop %v409
        %v411 = vmul.f32 %v393, 1.442695
        %v412 = vpow.pop %v411
        %v413 = vmul.f32 %v394, 1.442695
        %v414 = vpow.pop %v413
        %v415 = vsel %vm344, %v406, 0.0
        %v416 = vadd.f32 %v396, %v415
        %v417 = vrot.slane %v416, 4
        %v418 = vadd.f32 %v416, %v417
        %v419 = vrot.slane %v418, 2
        %v420 = vadd.f32 %v418, %v419
        %v421 = vrot.slane %v420, 1
        %v422 = vadd.f32 %v420, %v421
        %v423 = vsel %vm344, %v408, 0.0
        %v424 = vadd.f32 %v398, %v423
        %v425 = vrot.slane %v424, 4
        %v426 = vadd.f32 %v424, %v425
        %v427 = vrot.slane %v426, 2
        %v428 = vadd.f32 %v426, %v427
        %v429 = vrot.slane %v428, 1
        %v430 = vadd.f32 %v428, %v429
        %v431 = vsel %vm344, %v410, 0.0
        %v432 = vadd.f32 %v400, %v431
        %v433 = vrot.slane %v432, 4
        %v434 = vadd.f32 %v432, %v433
        %v435 = vrot.slane %v434, 2
        %v436 = vadd.f32 %v434, %v435
        %v437 = vrot.slane %v436, 1
        %v438 = vadd.f32 %v436, %v437
        %v439 = vsel %vm344, %v412, 0.0
        %v440 = vadd.f32 %v402, %v439
        %v441 = vrot.slane %v440, 4
        %v442 = vadd.f32 %v440, %v441
        %v443 = vrot.slane %v442, 2
        %v444 = vadd.f32 %v442, %v443
        %v445 = vrot.slane %v444, 1
        %v446 = vadd.f32 %v444, %v445
        %v447 = vsel %vm344, %v414, 0.0
        %v448 = vadd.f32 %v404, %v447
        %v449 = vrot.slane %v448, 4
        %v450 = vadd.f32 %v448, %v449
        %v451 = vrot.slane %v450, 2
        %v452 = vadd.f32 %v450, %v451
        %v453 = vrot.slane %v452, 1
        %v454 = vadd.f32 %v452, %v453
        %v455 = vlog2.pop %v422
        %v456 = vmul.f32 %v455, 0.6931472
        %v457 = vlog2.pop %v430
        %v458 = vmul.f32 %v457, 0.6931472
        %v459 = vlog2.pop %v438
        %v460 = vmul.f32 %v459, 0.6931472
        %v461 = vlog2.pop %v446
        %v462 = vmul.f32 %v461, 0.6931472
        %v463 = vlog2.pop %v454
        %v464 = vmul.f32 %v463, 0.6931472
        %v465 = vadd.f32 %v352, %v456
        %v466 = vadd.f32 %v360, %v458
        %v467 = vadd.f32 %v368, %v460
        %v468 = vadd.f32 %v376, %v462
        %v469 = vadd.f32 %v384, %v464
        %v470 = vlaneseq
        %v471 = vshrl.u32 %v470, 7
        %v472 = vadd.s32 %v471, 8
        %v473 = vld [vmem:[%s252] sm:$0x1f]
        %v474 = vlaneseq
        %v475 = vshrl.u32 %v474, 7
        %v476 = vsub.s32 0, %v475
        %v477 = vrot.slane %v473, %v476
        %v478 = vlaneseq
        %v479 = vshrl.u32 %v478, 7
        %v480 = vsub.s32 1, %v479
        %v481 = vrot.slane %v473, %v480
        %v482 = vlaneseq
        %v483 = vshrl.u32 %v482, 7
        %v484 = vsub.s32 2, %v483
        %v485 = vrot.slane %v473, %v484
        %v486 = vlaneseq
        %v487 = vshrl.u32 %v486, 7
        %v488 = vsub.s32 3, %v487
        %v489 = vrot.slane %v473, %v488
        %v490 = vlaneseq
        %v491 = vshrl.u32 %v490, 7
        %v492 = vsub.s32 4, %v491
        %v493 = vrot.slane %v473, %v492
        %vm494 = vcmp.eq.s32.totalorder %v471, %v477
        %vm495 = vcmp.eq.s32.totalorder %v471, %v481
        %vm496 = vcmp.eq.s32.totalorder %v471, %v485
        %vm497 = vcmp.eq.s32.totalorder %v471, %v489
        %vm498 = vcmp.eq.s32.totalorder %v471, %v493
        %vm499 = vcmp.eq.s32.totalorder %v472, %v477
        %vm500 = vcmp.eq.s32.totalorder %v472, %v481
        %vm501 = vcmp.eq.s32.totalorder %v472, %v485
        %vm502 = vcmp.eq.s32.totalorder %v472, %v489
        %vm503 = vcmp.eq.s32.totalorder %v472, %v493
        %v504 = vsel %vm494, %v268, 0.0
        %v505 = vsel %vm495, %v269, 0.0
        %v506 = vsel %vm496, %v270, 0.0
        %v507 = vsel %vm497, %v271, 0.0
        %v508 = vsel %vm498, %v272, 0.0
        %v509 = vsel %vm499, %v273, 0.0
        %v510 = vsel %vm500, %v274, 0.0
        %v511 = vsel %vm501, %v275, 0.0
        %v512 = vsel %vm502, %v276, 0.0
        %v513 = vsel %vm503, %v277, 0.0
        %v514 = vsel %vm344, %v509, 0.0
        %v515 = vadd.f32 %v504, %v514
        %v516 = vrot.slane %v515, 4
        %v517 = vadd.f32 %v515, %v516
        %v518 = vrot.slane %v517, 2
        %v519 = vadd.f32 %v517, %v518
        %v520 = vrot.slane %v519, 1
        %v521 = vadd.f32 %v519, %v520
        %v522 = vsel %vm344, %v510, 0.0
        %v523 = vadd.f32 %v505, %v522
        %v524 = vrot.slane %v523, 4
        %v525 = vadd.f32 %v523, %v524
        %v526 = vrot.slane %v525, 2
        %v527 = vadd.f32 %v525, %v526
        %v528 = vrot.slane %v527, 1
        %v529 = vadd.f32 %v527, %v528
        %v530 = vsel %vm344, %v511, 0.0
        %v531 = vadd.f32 %v506, %v530
        %v532 = vrot.slane %v531, 4
        %v533 = vadd.f32 %v531, %v532
        %v534 = vrot.slane %v533, 2
        %v535 = vadd.f32 %v533, %v534
        %v536 = vrot.slane %v535, 1
        %v537 = vadd.f32 %v535, %v536
        %v538 = vsel %vm344, %v512, 0.0
        %v539 = vadd.f32 %v507, %v538
        %v540 = vrot.slane %v539, 4
        %v541 = vadd.f32 %v539, %v540
        %v542 = vrot.slane %v541, 2
        %v543 = vadd.f32 %v541, %v542
        %v544 = vrot.slane %v543, 1
        %v545 = vadd.f32 %v543, %v544
        %v546 = vsel %vm344, %v513, 0.0
        %v547 = vadd.f32 %v508, %v546
        %v548 = vrot.slane %v547, 4
        %v549 = vadd.f32 %v547, %v548
        %v550 = vrot.slane %v549, 2
        %v551 = vadd.f32 %v549, %v550
        %v552 = vrot.slane %v551, 1
        %v553 = vadd.f32 %v551, %v552
        %v554 = vsub.f32 %v465, %v521
        %v555 = vsub.f32 %v466, %v529
        %v556 = vsub.f32 %v467, %v537
        %v557 = vsub.f32 %v468, %v545
        %v558 = vsub.f32 %v469, %v553
        %v564 = vcombine.low %v554, %v555
        %v565 = vcombine.low %v556, %v557
        %v567 = vunpack.c.l.s4 1966171168
        %v568 = vunpack.c.0.s8 %v567
        %v569 = vlaneseq
        %v570 = vshrl.u32 %v569, 7
        %v571 = vsub.s32 %v568, %v570
        %v572 = vrot.slane %v564, %v571
        %v574 = vunpack.c.l.s4 1966171168
        %v575 = vunpack.c.0.s8 %v574
        %v576 = vlaneseq
        %v577 = vshrl.u32 %v576, 7
        %v578 = vsub.s32 %v575, %v577
        %v579 = vrot.slane %v565, %v578
        %v581 = vunpack.c.l.s4 1966171168
        %v582 = vunpack.c.0.s8 %v581
        %v583 = vlaneseq
        %v584 = vshrl.u32 %v583, 7
        %v585 = vsub.s32 %v582, %v584
        %v586 = vrot.slane %v558, %v585
        %v587 = vcombine.low %v572, %v579
        %v589 = vunpack.c.l.s4 1966171168
        %v590 = vunpack.c.0.s8 %v589
        %v591 = vlaneseq
        %v592 = vshrl.u32 %v591, 7
        %v593 = vsub.s32 %v590, %v592
        %v594 = vrot.slane %v587, %v593
        %v596 = vunpack.c.l.s4 1966171168
        %v597 = vunpack.c.0.s8 %v596
        %v598 = vlaneseq
        %v599 = vshrl.u32 %v598, 7
        %v600 = vsub.s32 %v597, %v599
        %v601 = vrot.slane %v586, %v600
        %v602 = vcombine.low %v594, %v601
        %v604 = vsel %vm343, %v602, 0.0
        %v606 = vlaneseq
        %v607 = vshrl.u32 %v606, 7
        %v608 = vsub.s32 0, %v607
        %v609 = vrot.slane %v604, %v608
        %v610 = vlaneseq
        %v611 = vshrl.u32 %v610, 7
        %v612 = vsub.s32 1, %v611
        %v613 = vrot.slane %v604, %v612
        %v614 = vlaneseq
        %v615 = vshrl.u32 %v614, 7
        %v616 = vsub.s32 2, %v615
        %v617 = vrot.slane %v604, %v616
        %v618 = vlaneseq
        %v619 = vshrl.u32 %v618, 7
        %v620 = vsub.s32 3, %v619
        %v621 = vrot.slane %v604, %v620
        %v622 = vlaneseq
        %v623 = vshrl.u32 %v622, 7
        %v624 = vsub.s32 4, %v623
        %v625 = vrot.slane %v604, %v624
        %vm631 = vcmask 1040384
        %v632 = vsel %vm631, %v609, 0.0
        %v633 = vsel %vm631, %v613, 0.0
        %v634 = vadd.f32 %v632, %v633
        %v635 = vsel %vm631, %v617, 0.0
        %v636 = vadd.f32 %v634, %v635
        %v637 = vsel %vm631, %v621, 0.0
        %v638 = vadd.f32 %v636, %v637
        %v639 = vsel %vm631, %v625, 0.0
        %v640 = vadd.f32 %v638, %v639
        %641 = vadd.xlane.f32.xlu0 %v640
        %v642 = vpop.xlane.xlu0 %641
        %v643 = vrot.slane %v642, 4
        %v644 = vadd.f32 %v642, %v643
        %v645 = vrot.slane %v644, 2
        %v646 = vadd.f32 %v644, %v645
        %v647 = vrot.slane %v646, 1
        %v648 = vadd.f32 %v646, %v647
        %s649 = vtos %v648
        %v650 = vsel %vm343, 1, 0
        %v651 = vcvt.s32.f32 %v650
        %v653 = vlaneseq
        %v654 = vshrl.u32 %v653, 7
        %v655 = vsub.s32 0, %v654
        %v656 = vrot.slane %v651, %v655
        %v657 = vlaneseq
        %v658 = vshrl.u32 %v657, 7
        %v659 = vsub.s32 1, %v658
        %v660 = vrot.slane %v651, %v659
        %v661 = vlaneseq
        %v662 = vshrl.u32 %v661, 7
        %v663 = vsub.s32 2, %v662
        %v664 = vrot.slane %v651, %v663
        %v665 = vlaneseq
        %v666 = vshrl.u32 %v665, 7
        %v667 = vsub.s32 3, %v666
        %v668 = vrot.slane %v651, %v667
        %v669 = vlaneseq
        %v670 = vshrl.u32 %v669, 7
        %v671 = vsub.s32 4, %v670
        %v672 = vrot.slane %v651, %v671
        %v678 = vsel %vm631, %v656, 0.0
        %v679 = vsel %vm631, %v660, 0.0
        %v680 = vadd.f32 %v678, %v679
        %v681 = vsel %vm631, %v664, 0.0
        %v682 = vadd.f32 %v680, %v681
        %v683 = vsel %vm631, %v668, 0.0
        %v684 = vadd.f32 %v682, %v683
        %v685 = vsel %vm631, %v672, 0.0
        %v686 = vadd.f32 %v684, %v685
        %687 = vadd.xlane.f32.xlu0 %v686
        %v688 = vpop.xlane.xlu0 %687
        %v689 = vrot.slane %v688, 4
        %v690 = vadd.f32 %v688, %v689
        %v691 = vrot.slane %v690, 2
        %v692 = vadd.f32 %v690, %v691
        %v693 = vrot.slane %v692, 1
        %v694 = vadd.f32 %v692, %v693
        %s695 = vtos %v694
        %vm696 = vcmp.eq.s32.totalorder %v471, 0
        %vm697 = vcmp.eq.s32.totalorder %v280, 0
        %vm698 = vmand %vm696, %vm697
        %v699 = vstv %s649
        %v700 = vsel %vm698, %v699, 0.0
        %vm701 = vcmp.eq.s32.totalorder %v471, 1
        %vm702 = vmand %vm701, %vm697
        %v703 = vstv %s695
        %v704 = vsel %vm702, %v703, 0.0
        %v705 = vadd.f32 %v700, %v704
        %v706 = vld [vmem:[%s234] sm:$0xff]
        %v707 = vadd.f32 %v706, %v705
        %708 = vst [vmem:[%s234] sm:$0xff] %v707
        %s709 = sand.u32 %s121, 1
        %s710 = scalar_lea.sflag [#allocation3], %s709
        %s711 = sand.u32 %s121, 1
        %s712 = smul.addr %s711, 8
        %s713 = scalar_lea.vmem [#allocation2], %s712
        // Predicated region
        $region37: #{tpu_custom_call.1} parent=31 // pred_check
          %p714 = pneg %p131
        $region38: #{tpu_custom_call.1} parent=31 // pred_check_branch
          %716 = sbr.rel (%p714) target = $region40
        $region39: #{tpu_custom_call.1} parent=31 // pred_region
          %s718 = ssub.s32 128, 128
          %719 = vsyncadd %s710, %s718
          %s720 = smul.addr %s21, 128
          %s721 = scalar_lea.hbm %s3, %s720
          %s723 = sshll.u32 %s713, 4
          %s724 = int_to_ptr.vmem [resolvable:$true] %s723
          %726 = dma.vmem_to_hbm [thread:$0]  %s724, 128, %s721, %s710
        $region40: #{tpu_custom_call.1} parent=31 // pred_fallthru
          _
      $region32: #{tpu_custom_call.1} parent=5 // pred_fallthru
        _
      %p727 = scmp.le.s32.totalorder 2, %s12
      // Predicated region
      $region41: #{tpu_custom_call.1} parent=5 // pred_check
        %p728 = pneg %p727
      $region42: #{tpu_custom_call.1} parent=5 // pred_check_branch
        %730 = sbr.rel (%p728) target = $region44
      $region43: #{tpu_custom_call.1} parent=5 // pred_region
        %s731 = ssub.s32 %s12, 2
        // Predicated region
        $region45: #{tpu_custom_call.1} parent=43 // pred_check
          %p732 = pneg %p137
        $region46: #{tpu_custom_call.1} parent=43 // pred_check_branch
          %734 = sbr.rel (%p732) target = $region48
        $region47: #{tpu_custom_call.1} parent=43 // pred_region
          %s735 = sand.u32 %s122, 1
          %s736 = scalar_lea.sflag [#allocation3], %s735
          %s737 = sand.u32 %s122, 1
          %s738 = smul.addr %s737, 8
          %s739 = scalar_lea.vmem [#allocation2], %s738
          %740 = dma.done %s736, 128
        $region48: #{tpu_custom_call.1} parent=43 // pred_fallthru
          _
      $region44: #{tpu_custom_call.1} parent=5 // pred_fallthru
        _
    $region6: #{tpu_custom_call.1} parent=1 // loop_footer
      %s16 = sadd.s32 1, %s12
    $region7: #{tpu_custom_call.1} parent=1 // loop_footer_branch
      %11 = sbr.rel target = $region3
    $region8: #{tpu_custom_call.1} parent=1 // loop_exit
      _
    %741 = vsyncpa [#allocation3], 1
    %s742 = scalar_lea.sflag [#allocation3], 1
    %743 = vsyncpa %s742, 1

</llo_original>
